<compile_context>
chip_gen: v5e
topology: v5e:2x2
jax: 0.10.0
libtpu: 0.0.40
codegen_flags: <defaults>
</compile_context>

<pallas_src>
import functools

import jax
import jax.numpy as jnp
import numpy as np
from jax.experimental import pallas as pl
from jax.experimental.pallas import tpu as pltpu


def _ghm_bce_kernel(y_pred_ref, y_true_ref, lw_ref, out_ref, *, bins, batch, reduction):
    # All per-sample data is lane-dense: shape (1, Bp).
    x = y_pred_ref[...].astype(jnp.float32)        # (1, Bp) logits
    y = y_true_ref[...].astype(jnp.float32)        # (1, Bp) binary targets
    lw = lw_ref[...].astype(jnp.float32)           # (1, Bp) label weights

    # --- sigmoid + BCE-with-logits sharing a single EUP exp --------------------
    e = jnp.exp(-jnp.abs(x))                                         # (1, Bp)
    p = jnp.where(x >= 0.0, 1.0, e) / (1.0 + e)                      # sigmoid(x), stable
    g = jnp.abs(p - y)                                               # gradient norm in [0, 1]
    bce = jnp.maximum(x, 0.0) - x * y + jnp.log(1.0 + e)             # per-sample BCE (no reduce)

    valid = lw > 0.0
    valid_f = valid.astype(jnp.float32)
    tot = jnp.maximum(jnp.sum(valid_f), 1.0)                         # scalar

    # --- vectorized GHM histogram ----------------------------------------------
    # edges[i] = i/bins, edges[-1] += 1e-6  ->  bin = floor(g*bins), clamped to bins-1
    in_range = g < (1.0 + 1e-6)
    mask = valid & in_range
    bin_idx = jnp.minimum((g * bins).astype(jnp.int32), bins - 1)    # (1, Bp), g >= 0 so trunc==floor

    Bp = x.shape[1]
    row = jax.lax.broadcasted_iota(jnp.int32, (bins, Bp), 0)         # (bins, Bp)
    onehot = ((row == bin_idx) & mask).astype(jnp.float32)           # (bins, Bp)

    counts = jnp.sum(onehot, axis=1, keepdims=True)                  # (bins, 1) num_in_bin
    n = jnp.sum((counts > 0.0).astype(jnp.float32))                  # scalar: # non-empty bins
    inv_counts = jnp.where(counts > 0.0,
                           pl.reciprocal(jnp.maximum(counts, 1.0), approx=True),
                           0.0)                                      # (bins, 1)

    # per-sample 1/num_in_bin (0 for invalid / out-of-range samples)
    per_sample_inv = jnp.sum(onehot * inv_counts, axis=0, keepdims=True)   # (1, Bp)

    scale = tot * (1.0 / jnp.maximum(n, 1.0))   # tot / n; if n == 0 all weights are 0 anyway
    weights = per_sample_inv * scale
    loss = weights * bce                        # (1, Bp); padded lanes have weight 0

    if reduction == 'sum':
        out_ref[0, 0] = jnp.sum(loss)
    elif reduction == 'mean':
        # F.binary_cross_entropy_with_logits(..., reduction='mean') divides by numel == batch
        out_ref[0, 0] = jnp.sum(loss) * (1.0 / float(batch))
    else:  # 'none'
        out_ref[...] = loss


def ghm_binary_cross_entropy(y_pred, y_true, label_weight=None, *, bins=10,
                             momentum=0, reduction='mean'):
    assert reduction in (None, 'none', 'mean', 'sum')
    if momentum != 0:
        # TODO(synk): momentum > 0 requires a persistent acc_sum EMA buffer (stateful).
        raise NotImplementedError("momentum > 0 not implemented")
    if y_pred.ndim != y_true.ndim or y_pred.shape[1] != 1:
        raise ValueError(
            f'the dim of y_pred {y_pred.ndim} != the dim of y_true {y_true.ndim}')

    B = y_pred.shape[0]
    if label_weight is None:
        label_weight = jnp.ones((B, 1), jnp.float32)

    # Lane-dense layout, padded to a multiple of 128 lanes; pad samples are invalid (lw=0).
    Bp = max(128, ((B + 127) // 128) * 128)
    pad = Bp - B

    def to_lanes(a):
        a = a.reshape(1, B)
        if pad:
            a = jnp.pad(a, ((0, 0), (0, pad)))
        return a

    xp = to_lanes(y_pred)          # original dtype preserved; cast happens in-kernel
    yp = to_lanes(y_true)
    lwp = to_lanes(label_weight)

    red = 'none' if reduction in (None, 'none') else reduction
    if red == 'none':
        out_shape = jax.ShapeDtypeStruct((1, Bp), jnp.float32)
        out_spec = pl.BlockSpec(memory_space=pltpu.MemorySpace.VMEM)
    else:
        out_shape = jax.ShapeDtypeStruct((1, 1), jnp.float32)
        out_spec = pl.BlockSpec(memory_space=pltpu.MemorySpace.SMEM)

    kernel = functools.partial(_ghm_bce_kernel, bins=bins, batch=B, reduction=red)
    cost = pl.CostEstimate(
        flops=Bp * (16 + 4 * bins),
        transcendentals=2 * Bp,
        bytes_accessed=3 * Bp * 4 + (Bp * 4 if red == 'none' else 4),
    )

    out = pl.pallas_call(
        kernel,
        out_shape=out_shape,
        in_specs=[
            pl.BlockSpec(memory_space=pltpu.MemorySpace.VMEM),  # y_pred (1, Bp)
            pl.BlockSpec(memory_space=pltpu.MemorySpace.VMEM),  # y_true (1, Bp)
            pl.BlockSpec(memory_space=pltpu.MemorySpace.VMEM),  # label_weight (1, Bp)
        ],
        out_specs=out_spec,
        cost_estimate=cost,
    )(xp, yp, lwp)

    if red == 'none':
        return out[:, :B].reshape(B, 1)
    return out[0, 0]


def ghm_binary_cross_entropy_ref(y_pred, y_true, label_weight=None, *, bins=10,
                                 reduction='mean'):
    """Pure numpy reference mirroring the PyTorch forward (momentum=0)."""
    x = np.asarray(y_pred, np.float32).reshape(-1, 1)
    y = np.asarray(y_true, np.float32).reshape(-1, 1)
    lw = (np.ones_like(x) if label_weight is None
          else np.asarray(label_weight, np.float32).reshape(-1, 1))

    p = 1.0 / (1.0 + np.exp(-x))
    g = np.abs(p - y)
    valid = lw > 0
    tot = max(float(valid.sum()), 1.0)

    edges = (np.arange(bins + 1, dtype=np.float32) / bins).astype(np.float32)
    edges[-1] += 1e-6
    weights = np.zeros_like(x)
    n = 0
    for i in range(bins):
        inds = (g >= edges[i]) & (g < edges[i + 1]) & valid
        num_in_bin = int(inds.sum())
        if num_in_bin > 0:
            weights[inds] = tot / num_in_bin
            n += 1
    if n > 0:
        weights = weights / n

    bce = np.maximum(x, 0.0) - x * y + np.log1p(np.exp(-np.abs(x)))
    loss = weights * bce
    if reduction == 'sum':
        return float(loss.sum())
    if reduction == 'mean':
        return float(loss.mean())
    return loss


if __name__ == "__main__":
    B = 64
    key = jax.random.PRNGKey(0)
    k1, k2 = jax.random.split(key)

    y_pred = jax.random.normal(k1, (B, 1), dtype=jnp.float32) * 3.0
    y_true = (jax.random.uniform(k2, (B, 1)) > 0.5).astype(jnp.float32)
    # a couple of ignored samples to exercise the `valid` mask
    label_weight = jnp.ones((B, 1), jnp.float32).at[3, 0].set(0.0).at[17, 0].set(0.0)

    loss_mean = jax.block_until_ready(
        ghm_binary_cross_entropy(y_pred, y_true, label_weight, bins=10, reduction='mean'))
    loss_sum = jax.block_until_ready(
        ghm_binary_cross_entropy(y_pred, y_true, label_weight, bins=10, reduction='sum'))

    ref_mean = ghm_binary_cross_entropy_ref(np.array(y_pred), np.array(y_true),
                                            np.array(label_weight), bins=10, reduction='mean')
    ref_sum = ghm_binary_cross_entropy_ref(np.array(y_pred), np.array(y_true),
                                           np.array(label_weight), bins=10, reduction='sum')

    assert np.allclose(float(loss_mean), ref_mean, rtol=5e-3, atol=1e-5), (float(loss_mean), ref_mean)
    assert np.allclose(float(loss_sum), ref_sum, rtol=5e-3, atol=1e-5), (float(loss_sum), ref_sum)

    print("KERNEL_OK")
</pallas_src>

<mosaic_0001>
module attributes {stable_mosaic.version = 11 : i64} {
  func.func @_ghm_bce_kernel(%arg0: memref<1x128xf32, #tpu.memory_space<vmem>>, %arg1: memref<1x128xf32, #tpu.memory_space<vmem>>, %arg2: memref<1x128xf32, #tpu.memory_space<vmem>>, %arg3: memref<1x1xf32, #tpu.memory_space<smem>>) attributes {dimension_semantics = [], scalar_prefetch = 0 : i64, scratch_operands = 0 : i64, tpu.core_type = #tpu.core_type<tc>} {
    %c0 = arith.constant 0 : index
    %c0_0 = arith.constant 0 : index
    %0 = vector.load %arg0[%c0, %c0_0] : memref<1x128xf32, #tpu.memory_space<vmem>>, vector<1x128xf32>
    %c0_1 = arith.constant 0 : index
    %c0_2 = arith.constant 0 : index
    %1 = vector.load %arg1[%c0_1, %c0_2] : memref<1x128xf32, #tpu.memory_space<vmem>>, vector<1x128xf32>
    %c0_3 = arith.constant 0 : index
    %c0_4 = arith.constant 0 : index
    %2 = vector.load %arg2[%c0_3, %c0_4] : memref<1x128xf32, #tpu.memory_space<vmem>>, vector<1x128xf32>
    %3 = math.absf %0 : vector<1x128xf32>
    %cst = arith.constant 0.000000e+00 : f32
    %4 = vector.broadcast %cst : f32 to vector<1x128xf32>
    %5 = arith.subf %4, %3 : vector<1x128xf32>
    %6 = math.exp %5 : vector<1x128xf32>
    %cst_5 = arith.constant 0.000000e+00 : f32
    %7 = vector.broadcast %cst_5 : f32 to vector<1x128xf32>
    %8 = arith.cmpf oge, %0, %7 : vector<1x128xf32>
    %cst_6 = arith.constant 1.000000e+00 : f32
    %9 = vector.broadcast %cst_6 : f32 to vector<1x128xf32>
    %10 = arith.select %8, %9, %6 : vector<1x128xi1>, vector<1x128xf32>
    %cst_7 = arith.constant 1.000000e+00 : f32
    %11 = vector.broadcast %cst_7 : f32 to vector<1x128xf32>
    %12 = arith.addf %11, %6 : vector<1x128xf32>
    %13 = arith.divf %10, %12 : vector<1x128xf32>
    %14 = arith.subf %13, %1 : vector<1x128xf32>
    %15 = math.absf %14 : vector<1x128xf32>
    %cst_8 = arith.constant 0.000000e+00 : f32
    %16 = vector.broadcast %cst_8 : f32 to vector<1x128xf32>
    %17 = arith.maximumf %0, %16 : vector<1x128xf32>
    %18 = arith.mulf %0, %1 : vector<1x128xf32>
    %19 = arith.subf %17, %18 : vector<1x128xf32>
    %cst_9 = arith.constant 1.000000e+00 : f32
    %20 = vector.broadcast %cst_9 : f32 to vector<1x128xf32>
    %21 = arith.addf %20, %6 : vector<1x128xf32>
    %22 = math.log %21 : vector<1x128xf32>
    %23 = arith.addf %19, %22 : vector<1x128xf32>
    %cst_10 = arith.constant 0.000000e+00 : f32
    %24 = vector.broadcast %cst_10 : f32 to vector<1x128xf32>
    %25 = arith.cmpf ogt, %2, %24 : vector<1x128xf32>
    %26 = arith.extui %25 : vector<1x128xi1> to vector<1x128xi32>
    %27 = arith.sitofp %26 : vector<1x128xi32> to vector<1x128xf32>
    %28 = vector.shape_cast %27 : vector<1x128xf32> to vector<1x1x128xf32>
    %cst_11 = arith.constant dense<0.000000e+00> : vector<1xf32>
    %29 = vector.multi_reduction <add>, %28, %cst_11 [1, 2] : vector<1x1x128xf32> to vector<1xf32>
    %30 = vector.shape_cast %29 : vector<1xf32> to vector<1x1x1xf32>
    %31 = vector.extract %30[0, 0, 0] : f32 from vector<1x1x1xf32>
    %cst_12 = arith.constant 1.000000e+00 : f32
    %32 = arith.maximumf %31, %cst_12 : f32
    %cst_13 = arith.constant 1.00000095 : f32
    %33 = vector.broadcast %cst_13 : f32 to vector<1x128xf32>
    %34 = arith.cmpf olt, %15, %33 : vector<1x128xf32>
    %35 = arith.andi %25, %34 : vector<1x128xi1>
    %cst_14 = arith.constant 1.000000e+01 : f32
    %36 = vector.broadcast %cst_14 : f32 to vector<1x128xf32>
    %37 = arith.mulf %15, %36 : vector<1x128xf32>
    %38 = arith.fptosi %37 : vector<1x128xf32> to vector<1x128xi32>
    %c9_i32 = arith.constant 9 : i32
    %39 = vector.broadcast %c9_i32 : i32 to vector<1x128xi32>
    %40 = arith.minsi %38, %39 : vector<1x128xi32>
    %41 = tpu.iota {dimensions = array<i32: 0>} : vector<10x128xi32>
    %42 = vector.broadcast %40 : vector<1x128xi32> to vector<10x128xi32>
    %43 = arith.cmpi eq, %41, %42 : vector<10x128xi32>
    %44 = vector.broadcast %35 : vector<1x128xi1> to vector<10x128xi1>
    %45 = arith.andi %43, %44 : vector<10x128xi1>
    %46 = arith.extui %45 : vector<10x128xi1> to vector<10x128xi32>
    %47 = arith.sitofp %46 : vector<10x128xi32> to vector<10x128xf32>
    %cst_15 = arith.constant dense<0.000000e+00> : vector<10xf32>
    %48 = vector.multi_reduction <add>, %47, %cst_15 [1] : vector<10x128xf32> to vector<10xf32>
    %49 = vector.shape_cast %48 : vector<10xf32> to vector<10x1xf32>
    %cst_16 = arith.constant 0.000000e+00 : f32
    %50 = vector.broadcast %cst_16 : f32 to vector<10x1xf32>
    %51 = arith.cmpf ogt, %49, %50 : vector<10x1xf32>
    %52 = arith.extui %51 : vector<10x1xi1> to vector<10x1xi32>
    %53 = arith.sitofp %52 : vector<10x1xi32> to vector<10x1xf32>
    %54 = vector.shape_cast %53 : vector<10x1xf32> to vector<1x10x1xf32>
    %cst_17 = arith.constant dense<0.000000e+00> : vector<1xf32>
    %55 = vector.multi_reduction <add>, %54, %cst_17 [1, 2] : vector<1x10x1xf32> to vector<1xf32>
    %56 = vector.shape_cast %55 : vector<1xf32> to vector<1x1x1xf32>
    %57 = vector.extract %56[0, 0, 0] : f32 from vector<1x1x1xf32>
    %cst_18 = arith.constant 0.000000e+00 : f32
    %58 = vector.broadcast %cst_18 : f32 to vector<10x1xf32>
    %59 = arith.cmpf ogt, %49, %58 : vector<10x1xf32>
    %cst_19 = arith.constant 1.000000e+00 : f32
    %60 = vector.broadcast %cst_19 : f32 to vector<10x1xf32>
    %61 = arith.maximumf %49, %60 : vector<10x1xf32>
    %62 = tpu.reciprocal %61 {approx = true} : vector<10x1xf32> -> vector<10x1xf32>
    %cst_20 = arith.constant 0.000000e+00 : f32
    %63 = vector.broadcast %cst_20 : f32 to vector<10x1xf32>
    %64 = arith.select %59, %62, %63 : vector<10x1xi1>, vector<10x1xf32>
    %65 = vector.broadcast %64 : vector<10x1xf32> to vector<10x128xf32>
    %66 = arith.mulf %47, %65 : vector<10x128xf32>
    %cst_21 = arith.constant dense<0.000000e+00> : vector<128xf32>
    %67 = vector.multi_reduction <add>, %66, %cst_21 [0] : vector<10x128xf32> to vector<128xf32>
    %68 = vector.shape_cast %67 : vector<128xf32> to vector<1x128xf32>
    %cst_22 = arith.constant 1.000000e+00 : f32
    %69 = arith.maximumf %57, %cst_22 : f32
    %cst_23 = arith.constant 1.000000e+00 : f32
    %70 = arith.divf %cst_23, %69 : f32
    %71 = arith.mulf %32, %70 : f32
    %72 = vector.broadcast %71 : f32 to vector<1x128xf32>
    %73 = arith.mulf %68, %72 : vector<1x128xf32>
    %74 = arith.mulf %73, %23 : vector<1x128xf32>
    %75 = vector.shape_cast %74 : vector<1x128xf32> to vector<1x1x128xf32>
    %cst_24 = arith.constant dense<0.000000e+00> : vector<1xf32>
    %76 = vector.multi_reduction <add>, %75, %cst_24 [1, 2] : vector<1x1x128xf32> to vector<1xf32>
    %77 = vector.shape_cast %76 : vector<1xf32> to vector<1x1x1xf32>
    %78 = vector.extract %77[0, 0, 0] : f32 from vector<1x1x1xf32>
    %cst_25 = arith.constant 1.562500e-02 : f32
    %79 = arith.mulf %78, %cst_25 : f32
    %c0_26 = arith.constant 0 : index
    %c0_27 = arith.constant 0 : index
    %80 = memref.load %arg3[%c0_26, %c0_27] : memref<1x1xf32, #tpu.memory_space<smem>>
    memref.store %79, %arg3[%c0_26, %c0_27] : memref<1x1xf32, #tpu.memory_space<smem>>
    return
  }
}

</mosaic_0001>

<llo_original>
// kernel: tpu_custom_call.1
$region0: #{tpu_custom_call.1}
  #allocation0 [shape = 'u32[]', space=smem, size = 0x4, offset = 0x4, fixed_abs, tag = 'smem constant byte address 0x4 - core index']
  #allocation1 [shape = 'u32[72,128]{1,0:T(1,128)}', space=vmem, size = 0x9000, scoped, tag = 'internal scratch']
  %s0 = inlined_call_operand.hbm [shape: f32[1,128], index: 0, kind: input, shape index: {}]
  %s1 = inlined_call_operand.hbm [shape: f32[1,128], index: 1, kind: input, shape index: {}]
  %s2 = inlined_call_operand.vmem [shape: f32[1,128], index: 2, kind: input, shape index: {}]
  %s3 = inlined_call_operand.hbm [shape: f32[1,1], index: 3, kind: output, shape index: {}]
  %s4 = sld [smem:[#allocation0]]
  $region30: #{tpu_custom_call.1} parent=0
    _
  %s6 = ssub.s32 1, %s4
  %s7 = scalar_select 0, %s6, %s4
  $region1: #{tpu_custom_call.1} parent=0
    #allocation2 [shape = 'u8[512]{0}', space=vmem, size = 0x400, scoped, tag = 'input window, operand 0, single buffered']
    #allocation3 [shape = 's32[1]{0}', space=sflag, size = 0x4, scoped, tag = 'scoped memory for tpu_custom_call.1']
    #allocation4 [shape = 's32[1]{0}', space=sflag, size = 0x4, scoped, tag = 'scoped memory for tpu_custom_call.1']
    #allocation5 [shape = 'u8[512]{0}', space=vmem, size = 0x400, scoped, tag = 'input window, operand 1, single buffered']
    #allocation6 [shape = 's32[1]{0}', space=sflag, size = 0x4, scoped, tag = 'scoped memory for tpu_custom_call.1']
    #allocation7 [shape = 'u8[512]{0}', space=smem, size = 0x200, scoped, tag = 'output window, operand 0, single buffered']
    %8 = vsyncpa [#allocation3], 0
    %9 = vsyncpa [#allocation6], 0
    %10 = vsyncpa [#allocation4], 0
    // Predicated region
    $region2: #{tpu_custom_call.1} parent=1 // pred_check
      _
    $region3: #{tpu_custom_call.1} parent=1 // pred_check_branch
      %12 = sbr.rel (0) target = $region5
    $region4: #{tpu_custom_call.1} parent=1 // pred_region
      %14 = vsyncadd [#allocation3], 0
      %s16 = sshll.u32 %s0, 4
      %s17 = int_to_ptr.hbm [resolvable:$true] %s16
      %s18 = sshll.u32 [#allocation2], 4
      %s19 = int_to_ptr.vmem [resolvable:$true] %s18
      %21 = dma.hbm_to_vmem [thread:$0]  %s17, 16, %s19, [#allocation3]
    $region5: #{tpu_custom_call.1} parent=1 // pred_fallthru
      _
    // Predicated region
    $region6: #{tpu_custom_call.1} parent=1 // pred_check
      _
    $region7: #{tpu_custom_call.1} parent=1 // pred_check_branch
      %23 = sbr.rel (0) target = $region9
    $region8: #{tpu_custom_call.1} parent=1 // pred_region
      %25 = vsyncadd [#allocation6], 0
      %s27 = sshll.u32 %s1, 4
      %s28 = int_to_ptr.hbm [resolvable:$true] %s27
      %s29 = sshll.u32 [#allocation5], 4
      %s30 = int_to_ptr.vmem [resolvable:$true] %s29
      %32 = dma.hbm_to_vmem [thread:$0]  %s28, 16, %s30, [#allocation6]
    $region9: #{tpu_custom_call.1} parent=1 // pred_fallthru
      _
    // Predicated region
    $region10: #{tpu_custom_call.1} parent=1 // pred_check
      _
    $region11: #{tpu_custom_call.1} parent=1 // pred_check_branch
      %34 = sbr.rel (0) target = $region13
    $region12: #{tpu_custom_call.1} parent=1 // pred_region
      _
    $region13: #{tpu_custom_call.1} parent=1 // pred_fallthru
      _
    // Predicated region
    $region14: #{tpu_custom_call.1} parent=1 // pred_check
      _
    $region15: #{tpu_custom_call.1} parent=1 // pred_check_branch
      %36 = sbr.rel (0) target = $region17
    $region16: #{tpu_custom_call.1} parent=1 // pred_region
      %38 = dma.done [#allocation3], 16
    $region17: #{tpu_custom_call.1} parent=1 // pred_fallthru
      _
    // Predicated region
    $region18: #{tpu_custom_call.1} parent=1 // pred_check
      _
    $region19: #{tpu_custom_call.1} parent=1 // pred_check_branch
      %40 = sbr.rel (0) target = $region21
    $region20: #{tpu_custom_call.1} parent=1 // pred_region
      %42 = dma.done [#allocation6], 16
    $region21: #{tpu_custom_call.1} parent=1 // pred_fallthru
      _
    %v43 = vld [vmem:[#allocation2] sm:$0x1]
    %v44 = vld [vmem:[#allocation5] sm:$0x1]
    %v45 = vld [vmem:[%s2] sm:$0x1]
    %v46 = vand.u32 2147483647, %v43
    %v47 = vsub.f32 0.0, %v46
    %v48 = vmul.f32 %v47, 1.442695
    %v49 = vpow.pop %v48
    %vm50 = vcmp.ge.f32.partialorder %v43, 0.0
    %v51 = vsel %vm50, 1.0, %v49
    %v52 = vadd.f32 %v49, 1.0
    %v53 = vrcp.pop %v52
    %v54 = vmul.f32 %v52, %v53
    %v55 = vsub.f32 1.0, %v54
    %v56 = vmul.f32 %v53, %v55
    %v57 = vadd.f32 %v53, %v56
    %vm58 = vweird.f32 %v52
    %vm59 = vweird.f32 %v53
    %vm60 = vmor %vm58, %vm59
    %v61 = vsel %vm60, %v53, %v57
    %v62 = vand.u32 2147483647, %v52
    %vm63 = vcmp.eq.f32.partialorder %v62, 8.507059e+37
    %v64 = vand.u32 %v52, 2147483648
    %v65 = vor.u32 1.1754944e-38, %v64
    %v66 = vsel %vm63, %v65, %v61
    %v67 = vmul.f32 %v51, %v66
    %v68 = vsub.f32 %v67, %v44
    %v69 = vand.u32 2147483647, %v68
    %v70 = vmax.f32 %v43, 0.0
    %v71 = vmul.f32 %v43, %v44
    %v72 = vsub.f32 %v70, %v71
    %v73 = vlog2.pop %v52
    %v74 = vmul.f32 %v73, 0.6931472
    %v75 = vadd.f32 %v72, %v74
    %vm76 = vcmp.gt.f32.partialorder %v45, 0.0
    %v77 = vsel %vm76, 1, 0
    %v78 = vcvt.s32.f32 %v77
    %vm79 = vcmask 1040384
    %v80 = vsel %vm79, %v78, 0.0
    %81 = vadd.xlane.f32.xlu0 %v80
    %v82 = vpop.xlane.xlu0 %81
    %v83 = vrot.slane %v82, 4
    %v84 = vadd.f32 %v82, %v83
    %v85 = vrot.slane %v84, 2
    %v86 = vadd.f32 %v84, %v85
    %v87 = vrot.slane %v86, 1
    %v88 = vadd.f32 %v86, %v87
    %s89 = vtos %v88
    %s90 = smax.f32 %s89, 1.0
    %vm91 = vcmp.lt.f32.partialorder %v69, 1.000001
    %vm92 = vmand %vm76, %vm91
    %v93 = vmul.f32 %v69, 10.0
    %v94 = vcvt.f32.s32.to.zero.pseudo %v93
    %vm95 = vcmp.lt.s32.totalorder %v94, 9
    %v96 = vsel %vm95, %v94, 9
    %v97 = vlaneseq
    %v98 = vshrl.u32 %v97, 7
    %v99 = vadd.s32 %v98, 8
    %v100 = vperm.slane %v96, 0
    %vm101 = vcmp.eq.s32.totalorder %v98, %v100
    %vm102 = vcmp.eq.s32.totalorder %v99, %v100
    %v103 = vsel %vm92, 1, 0
    %v104 = vperm.slane %v103, 0
    %vm105 = vcmp.eq.s32.totalorder %v104, 1
    %vm106 = vmand %vm101, %vm105
    %vm107 = vmand %vm102, %vm105
    %v108 = vsel %vm106, 1, 0
    %v109 = vsel %vm107, 1, 0
    %v110 = vcvt.s32.f32 %v108
    %v111 = vcvt.s32.f32 %v109
    %112 = vadd.xlane.f32.xlu0 %v110
    %v113 = vpop.xlane.xlu0 %112
    %vm114 = vcmask 1041408
    %v115 = vsel %vm114, %v111, 0.0
    %116 = vadd.xlane.f32.xlu0 %v115
    %v117 = vpop.xlane.xlu0 %116
    %vm118 = vcmp.gt.f32.partialorder %v113, 0.0
    %vm119 = vcmp.gt.f32.partialorder %v117, 0.0
    %v120 = vsel %vm118, 1, 0
    %v121 = vsel %vm119, 1, 0
    %v122 = vcvt.s32.f32 %v120
    %v123 = vcvt.s32.f32 %v121
    %vm124 = vcmask 7168
    %v125 = vsel %vm124, %v122, 0.0
    %vm126 = vcmask 1024
    %v127 = vsel %vm126, %v123, 0.0
    %v128 = vadd.f32 %v125, %v127
    %129 = vadd.xlane.f32.xlu0 %v128
    %v130 = vpop.xlane.xlu0 %129
    %v131 = vrot.slane %v130, 4
    %v132 = vadd.f32 %v130, %v131
    %v133 = vrot.slane %v132, 2
    %v134 = vadd.f32 %v132, %v133
    %v135 = vrot.slane %v134, 1
    %v136 = vadd.f32 %v134, %v135
    %s137 = vtos %v136
    %v138 = vmax.f32 %v113, 1.0
    %v139 = vmax.f32 %v117, 1.0
    %v140 = vrcp.pop %v138
    %v141 = vrcp.pop %v139
    %v142 = vsel %vm118, %v140, 0.0
    %v143 = vsel %vm119, %v141, 0.0
    %v144 = vmul.f32 %v110, %v142
    %v145 = vmul.f32 %v111, %v143
    %v146 = vsel %vm114, %v145, 0.0
    %v147 = vadd.f32 %v144, %v146
    %v148 = vrot.slane %v147, 4
    %v149 = vadd.f32 %v147, %v148
    %v150 = vrot.slane %v149, 2
    %v151 = vadd.f32 %v149, %v150
    %v152 = vrot.slane %v151, 1
    %v153 = vadd.f32 %v151, %v152
    %s154 = smax.f32 %s137, 1.0
    %v155 = vstv %s154
    %v156 = vrcp.pop %v155
    %v157 = vmul.f32 %v155, %v156
    %v158 = vsub.f32 1.0, %v157
    %v159 = vmul.f32 %v156, %v158
    %v160 = vadd.f32 %v156, %v159
    %vm161 = vweird.f32 %v155
    %vm162 = vweird.f32 %v156
    %vm163 = vmor %vm161, %vm162
    %v164 = vsel %vm163, %v156, %v160
    %v165 = vand.u32 2147483647, %v155
    %vm166 = vcmp.eq.f32.partialorder %v165, 8.507059e+37
    %v167 = vand.u32 %v155, 2147483648
    %v168 = vor.u32 1.1754944e-38, %v167
    %v169 = vsel %vm166, %v168, %v164
    %s170 = vtos %v169
    %s171 = smul.f32 %s90, %s170
    %v172 = vstv %s171
    %v173 = vmul.f32 %v153, %v172
    %v174 = vmul.f32 %v173, %v75
    %v175 = vsel %vm79, %v174, 0.0
    %176 = vadd.xlane.f32.xlu0 %v175
    %v177 = vpop.xlane.xlu0 %176
    %v178 = vrot.slane %v177, 4
    %v179 = vadd.f32 %v177, %v178
    %v180 = vrot.slane %v179, 2
    %v181 = vadd.f32 %v179, %v180
    %v182 = vrot.slane %v181, 1
    %v183 = vadd.f32 %v181, %v182
    %s184 = vtos %v183
    %s185 = smul.f32 %s184, 0.015625
    %s186 = scalar_lea.smem [#allocation7], 0
    %187 = sst [smem:[%s186]] %s185
    // Predicated region
    $region22: #{tpu_custom_call.1} parent=1 // pred_check
      _
    $region23: #{tpu_custom_call.1} parent=1 // pred_check_branch
      %189 = sbr.rel (0) target = $region25
    $region24: #{tpu_custom_call.1} parent=1 // pred_region
      %191 = vsyncadd [#allocation4], 0
      %s193 = sshll.u32 %s3, 4
      %s194 = int_to_ptr.hbm [resolvable:$true] %s193
      %196 = dma.smem_to_hbm [#allocation7], 16, %s194, [#allocation4]
    $region25: #{tpu_custom_call.1} parent=1 // pred_fallthru
      _
    // Predicated region
    $region26: #{tpu_custom_call.1} parent=1 // pred_check
      _
    $region27: #{tpu_custom_call.1} parent=1 // pred_check_branch
      %198 = sbr.rel (0) target = $region29
    $region28: #{tpu_custom_call.1} parent=1 // pred_region
      %200 = dma.done [#allocation4], 16
    $region29: #{tpu_custom_call.1} parent=1 // pred_fallthru
      _
    %201 = sfence
    %202 = vsyncpa [#allocation3], 1
    %203 = vsyncpa [#allocation6], 1
    %204 = vsyncpa [#allocation4], 1

</llo_original>
